<compile_context>
chip_gen: v7x
topology: tpu7x:2x2x1
jax: 0.10.0
libtpu: 0.0.40
codegen_flags: <defaults>
</compile_context>

<pallas_src>
import jax
import jax.numpy as jnp
from jax import lax
from jax.experimental import pallas as pl
from jax.experimental.pallas import tpu as pltpu

# ----------------------------- sizes (small test config) -----------------------------
BS = 2       # batch
L = 16       # context sequence length
N_PH = 8     # number of phrases
H = 32       # hidden_dim
N_Q = 4      # num_queries_per_phrase
LN_EPS = 1e-5
NEG_INF = -1e30  # large finite negative for the additive attention mask

# MXU operand dtype.  Set to jnp.bfloat16 on v6e/v7x for larger H/L/BS (per review); operands are
# cast only immediately before each dot, accumulation stays f32, all VPU math stays f32.
MXU_DTYPE = jnp.float32

# --- static lane offsets inside the packed activation slab (BS*N_PH, 4H) ---
A_QF = 0                    # phrase (query) features
A_MASK = H                  # additive attention mask (padding + block-diagonal batch structure)
A_FT = H + BS * L           # per-batch first context token, expanded over phrases
A_VEC = 2 * H + BS * L      # 12 bias / LayerNorm rows (rows 0..11 valid, rest zero-padded)

# --- static lane offsets inside the packed weight slab (H, 7H) ---
W_K, W_Q, W_V, W_CO, W_F1A, W_F1B, W_F2 = (i * H for i in range(7))

# --- row indices of the packed bias/LayerNorm vectors ---
(B1, B2, B3, BCO, GCO, BECO, BF1, GF1, BEF1, BF2, GF2, BEF2) = range(12)


def _layer_norm(x, gamma, beta):
    mu = jnp.mean(x, axis=-1, keepdims=True)
    var = jnp.mean((x - mu) ** 2, axis=-1, keepdims=True)
    return (x - mu) * lax.rsqrt(var + LN_EPS) * gamma + beta


def query_encoder_kernel(
    ctx_ref,    # (BS*L, H)          context features, batch folded into rows
    act_ref,    # (BS*N_PH, 4H)      [qf | mask_add | first_tok | vec(12 rows, padded)]
    w_ref,      # (H, 7H)            [Wk | Wq | Wv | Wco | Wf1_top | Wf1_bot | Wf2] (pre-transposed)
    qemb_ref,   # (1, N_Q*2H)        flattened learnable query embeddings
    out_ref,    # (BS*N_PH, N_Q*2H)  lane-dense output slab
):
    ctx = ctx_ref[...]
    act = act_ref[...]
    w = w_ref[...]

    def vrow(i):                      # one packed (1, H) bias / LN vector
        return act[i:i + 1, A_VEC:A_VEC + H]

    def mxu(a, b):                    # dot with operand cast at the MXU boundary only
        return jnp.dot(a.astype(MXU_DTYPE), b.astype(MXU_DTYPE),
                       preferred_element_type=jnp.float32)

    qf = act[:, A_QF:A_QF + H]
    mask_add = act[:, A_MASK:A_MASK + BS * L]
    first_tok = act[:, A_FT:A_FT + H]

    # ---- early, input-only MXU pushes (no dependence on each other's results) ----
    # fused Q/V projection of ALL context tokens: (BS*L, H) @ (H, 2H)
    qv = mxu(ctx, w[:, W_Q:W_Q + 2 * H])
    q_all = qv[:, 0:H] + vrow(B2)
    v_all = qv[:, H:2 * H] + vrow(B3)
    # K projection of each batch's first context token only (already phrase-expanded)
    k_exp = mxu(first_tok, w[:, W_K:W_K + H]) + vrow(B1)
    # qf branch of fuse_encoder_query layer 1 — hoisted off the attention critical path
    qpart = mxu(qf, w[:, W_F1B:W_F1B + H]) + vrow(BF1)

    # ---- attention over all context tokens; the additive mask applies both the padding mask
    #      and the block-diagonal (same-batch) structure, so one softmax + one matmul replace
    #      the per-batch bmm's ----
    att = lax.dot_general(k_exp.astype(MXU_DTYPE), q_all.astype(MXU_DTYPE),
                          (((1,), (1,)), ((), ())),
                          preferred_element_type=jnp.float32)   # (BS*N_PH, BS*L)
    att = att + mask_add
    m = jnp.max(att, axis=-1, keepdims=True)
    e = jnp.exp(att - m)
    p = e / jnp.sum(e, axis=-1, keepdims=True)                  # exact divide (review note)

    # (v * att).sum(dim=-2)  ==  p @ v  (block-diagonal p => per-batch weighted sum)
    context = mxu(p, v_all)                                     # (BS*N_PH, H)

    # context_out: Linear + LayerNorm, then residual with the raw first context token
    context = mxu(context, w[:, W_CO:W_CO + H]) + vrow(BCO)
    context = _layer_norm(context, vrow(GCO), vrow(BECO))
    context = first_tok + context

    # fuse_encoder_query on cat([context, qf], -1): context branch + pre-computed qf branch
    h = mxu(context, w[:, W_F1A:W_F1A + H]) + qpart
    h = jnp.maximum(_layer_norm(h, vrow(GF1), vrow(BEF1)), 0.0)
    # Dropout(0.1) -> identity in eval mode
    h = mxu(h, w[:, W_F2:W_F2 + H]) + vrow(BF2)
    h = jnp.maximum(_layer_norm(h, vrow(GF2), vrow(BEF2)), 0.0)  # (BS*N_PH, H)

    # phrase_queries = repeat(h, 2) per query slot + learnable embeddings,
    # written as one lane-dense (BS*N_PH, N_Q*2H) slab (unmasked full-vreg stores).
    n_rep = out_ref.shape[1] // H
    out_ref[...] = jnp.tile(h, (1, n_rep)) + qemb_ref[...]


def query_encoder_forward(lang_context_feat, lang_query_feat, mask_query_context, params):
    bs, seq_l, hid = lang_context_feat.shape
    _, n_ph, _ = lang_query_feat.shape
    n_q = params["qemb"].shape[0]

    # ---- wrapper-side (pure JAX) packing: layout plumbing, not compute hoisting ----
    ctx2 = lang_context_feat.reshape(bs * seq_l, hid)
    qf2 = lang_query_feat.reshape(bs * n_ph, hid)
    first_tok = jnp.repeat(lang_context_feat[:, 0, :], n_ph, axis=0)        # (bs*n_ph, hid)

    # additive attention mask with block-diagonal batch structure: 0 = attend, -1e30 = drop
    same_batch = jnp.eye(bs, dtype=bool)[:, None, :, None]                  # (bs,1,bs,1)
    keep = same_batch & ~mask_query_context[:, :, None, :]                  # (bs,n_ph,bs,seq_l)
    mask_add = jnp.where(keep, 0.0, NEG_INF).astype(jnp.float32)
    mask_add = mask_add.reshape(bs * n_ph, bs * seq_l)

    # packed bias / LayerNorm rows, sublane-padded to bs*n_ph rows (requires bs*n_ph >= 12)
    vec = jnp.concatenate(
        [params["b1"], params["b2"], params["b3"], params["bco"],
         params["gco"], params["beco"], params["bf1"], params["gf1"],
         params["bef1"], params["bf2"], params["gf2"], params["bef2"]], axis=0)
    vec_pad = jnp.pad(vec, ((0, bs * n_ph - vec.shape[0]), (0, 0)))

    # one lane-dense activation slab: (bs*n_ph, hid + bs*seq_l + 2*hid) = (16, 128) here
    act = jnp.concatenate([qf2, mask_add, first_tok, vec_pad], axis=1)

    # one lane-dense weight slab (in a real model this packing is done once at init)
    w = jnp.concatenate(
        [params["w1t"], params["w2t"], params["w3t"], params["wcot"],
         params["wf1t"][:hid, :], params["wf1t"][hid:, :], params["wf2t"]], axis=1)  # (H, 7H)
    qemb_flat = params["qemb"].reshape(1, n_q * 2 * hid)

    out_elems = (bs * n_ph) * (n_q * 2 * hid)
    flops = 2 * ((bs * seq_l) * hid * (2 * hid)                 # fused Q/V projection
                 + 5 * (bs * n_ph) * hid * hid                  # k_exp, qpart, wco, wf1a, wf2
                 + 2 * (bs * n_ph) * hid * (bs * seq_l))        # att scores, p @ v
    transcendentals = (bs * n_ph) * (bs * seq_l) + 3 * (bs * n_ph)
    bytes_accessed = 4 * (ctx2.size + act.size + w.size + qemb_flat.size + out_elems)

    vmem_spec = pl.BlockSpec(memory_space=pltpu.MemorySpace.VMEM)

    # single-shot, gridless kernel: whole problem fits trivially in VMEM on v5e/v6e/v7x.
    out = pl.pallas_call(
        query_encoder_kernel,
        out_shape=jax.ShapeDtypeStruct((bs * n_ph, n_q * 2 * hid), jnp.float32),
        in_specs=[vmem_spec] * 4,
        out_specs=vmem_spec,
        cost_estimate=pl.CostEstimate(flops=flops,
                                      transcendentals=transcendentals,
                                      bytes_accessed=bytes_accessed),
    )(ctx2, act, w, qemb_flat)

    # glue: (bs*n_ph, n_q*2H) -> (bs, n_ph*n_q, 2H) -> transpose(0,1) -> split into two H chunks
    pq = out.reshape(bs, n_ph * n_q, 2 * hid).transpose(1, 0, 2)
    return pq[..., :hid], pq[..., hid:]


# ----------------------------- pure-JAX reference (mirrors PyTorch) -----------------------------
def query_encoder_reference(ctx, qf, mask, params):
    lin = lambda x, wt, b: jnp.einsum("...i,io->...o", x, wt) + b
    ln = lambda x, g, be: _layer_norm(x, g, be)

    k = lin(ctx[:, 0:1, :], params["w1t"], params["b1"])          # (B,1,H)
    q = lin(ctx, params["w2t"], params["b2"])                     # (B,L,H)
    v = lin(ctx, params["w3t"], params["b3"])                     # (B,L,H)
    att = jnp.einsum("bih,blh->bil", k, q)                        # (B,1,L)
    att = jnp.broadcast_to(att, mask.shape)                       # (B,P,L)
    att = jnp.where(mask, -jnp.inf, att)
    p = jax.nn.softmax(att, axis=-1)                              # (B,P,L)
    context = jnp.einsum("bpl,blh->bph", p, v)                    # (B,P,H)
    context = ln(lin(context, params["wcot"], params["bco"]), params["gco"], params["beco"])
    context = ctx[:, None, 0, :] + context
    fused = jnp.concatenate([context, qf], axis=-1)               # (B,P,2H)
    h = jnp.maximum(ln(lin(fused, params["wf1t"], params["bf1"]), params["gf1"], params["bef1"]), 0.0)
    h = jnp.maximum(ln(lin(h, params["wf2t"], params["bf2"]), params["gf2"], params["bef2"]), 0.0)
    pq = jnp.tile(h[:, :, None, :], (1, 1, 1, 2)) + params["qemb"][None, None, :, :]
    pq = pq.reshape(h.shape[0], -1, 2 * H).transpose(1, 0, 2)
    return pq[..., :H], pq[..., H:]


# ----------------------------- params & test -----------------------------
def init_params(key):
    ks = jax.random.split(key, 8)
    normal = lambda k, shape, s=0.05: (s * jax.random.normal(k, shape)).astype(jnp.float32)
    p = {
        # linear weights stored pre-transposed to (in, out)
        "w1t": normal(ks[0], (H, H)), "b1": jnp.zeros((1, H), jnp.float32),
        "w2t": normal(ks[1], (H, H)), "b2": jnp.zeros((1, H), jnp.float32),
        "w3t": normal(ks[2], (H, H)), "b3": jnp.zeros((1, H), jnp.float32),
        "wcot": normal(ks[3], (H, H)), "bco": jnp.zeros((1, H), jnp.float32),
        "gco": jnp.ones((1, H), jnp.float32), "beco": jnp.zeros((1, H), jnp.float32),
        "wf1t": normal(ks[4], (2 * H, H)), "bf1": jnp.zeros((1, H), jnp.float32),
        "gf1": jnp.ones((1, H), jnp.float32), "bef1": jnp.zeros((1, H), jnp.float32),
        "wf2t": normal(ks[5], (H, H)), "bf2": jnp.zeros((1, H), jnp.float32),
        "gf2": jnp.ones((1, H), jnp.float32), "bef2": jnp.zeros((1, H), jnp.float32),
        # nn.Embedding default init ~ N(0,1)
        "qemb": jax.random.normal(ks[6], (N_Q, 2 * H)).astype(jnp.float32),
    }
    return p


if __name__ == "__main__":
    key = jax.random.PRNGKey(0)
    kp, kc, kq, km = jax.random.split(key, 4)
    params = init_params(kp)

    lang_context_feat = jax.random.normal(kc, (BS, L, H), dtype=jnp.float32)
    lang_query_feat = jax.random.normal(kq, (BS, N_PH, H), dtype=jnp.float32)
    mask = jax.random.uniform(km, (BS, N_PH, L)) > 0.7
    # guarantee at least one unmasked context token per (batch, phrase) row
    # (PyTorch gives NaN for fully-masked rows; this kernel degrades to a uniform softmax)
    mask = mask.at[:, :, 0].set(False)

    out0, out1 = query_encoder_forward(lang_context_feat, lang_query_feat, mask, params)
    jax.block_until_ready(out0)
    jax.block_until_ready(out1)

    ref0, ref1 = query_encoder_reference(lang_context_feat, lang_query_feat, mask, params)
    assert out0.shape == (N_PH * N_Q, BS, H) and out1.shape == (N_PH * N_Q, BS, H)
    assert jnp.allclose(out0, ref0, atol=1e-2, rtol=1e-2)
    assert jnp.allclose(out1, ref1, atol=1e-2, rtol=1e-2)

    print("KERNEL_OK")
</pallas_src>

<mosaic_0001>
module attributes {stable_mosaic.version = 11 : i64} {
  func.func @query_encoder_kernel(%arg0: memref<32x32xf32, #tpu.memory_space<vmem>>, %arg1: memref<16x128xf32, #tpu.memory_space<vmem>>, %arg2: memref<32x224xf32, #tpu.memory_space<vmem>>, %arg3: memref<1x256xf32, #tpu.memory_space<vmem>>, %arg4: memref<16x256xf32, #tpu.memory_space<vmem>>) attributes {dimension_semantics = [], scalar_prefetch = 0 : i64, scratch_operands = 0 : i64, tpu.core_type = #tpu.core_type<tc>} {
    %c0 = arith.constant 0 : index
    %c0_0 = arith.constant 0 : index
    %0 = vector.load %arg0[%c0, %c0_0] : memref<32x32xf32, #tpu.memory_space<vmem>>, vector<32x32xf32>
    %c0_1 = arith.constant 0 : index
    %c0_2 = arith.constant 0 : index
    %1 = vector.load %arg1[%c0_1, %c0_2] : memref<16x128xf32, #tpu.memory_space<vmem>>, vector<16x128xf32>
    %c0_3 = arith.constant 0 : index
    %c0_4 = arith.constant 0 : index
    %2 = vector.load %arg2[%c0_3, %c0_4] : memref<32x224xf32, #tpu.memory_space<vmem>>, vector<32x224xf32>
    %3 = vector.extract_strided_slice %1 {offsets = [0, 0], sizes = [16, 32], strides = [1, 1]} : vector<16x128xf32> to vector<16x32xf32>
    %4 = vector.extract_strided_slice %1 {offsets = [0, 32], sizes = [16, 32], strides = [1, 1]} : vector<16x128xf32> to vector<16x32xf32>
    %5 = vector.extract_strided_slice %1 {offsets = [0, 64], sizes = [16, 32], strides = [1, 1]} : vector<16x128xf32> to vector<16x32xf32>
    %6 = vector.extract_strided_slice %2 {offsets = [0, 32], sizes = [32, 64], strides = [1, 1]} : vector<32x224xf32> to vector<32x64xf32>
    %cst = arith.constant dense<0.000000e+00> : vector<32x64xf32>
    %7 = tpu.matmul %0, %6, %cst {dimension_numbers = #tpu.dot_dimension_numbers<[1], [0], [0], [1], [0, 0, 1, 1], [], []>} : vector<32x32xf32>, vector<32x64xf32>, vector<32x64xf32> -> vector<32x64xf32>
    %8 = vector.extract_strided_slice %7 {offsets = [0, 0], sizes = [32, 32], strides = [1, 1]} : vector<32x64xf32> to vector<32x32xf32>
    %9 = vector.extract_strided_slice %1 {offsets = [1, 96], sizes = [1, 32], strides = [1, 1]} : vector<16x128xf32> to vector<1x32xf32>
    %10 = vector.broadcast %9 : vector<1x32xf32> to vector<32x32xf32>
    %11 = arith.addf %8, %10 : vector<32x32xf32>
    %12 = vector.extract_strided_slice %7 {offsets = [0, 32], sizes = [32, 32], strides = [1, 1]} : vector<32x64xf32> to vector<32x32xf32>
    %13 = vector.extract_strided_slice %1 {offsets = [2, 96], sizes = [1, 32], strides = [1, 1]} : vector<16x128xf32> to vector<1x32xf32>
    %14 = vector.broadcast %13 : vector<1x32xf32> to vector<32x32xf32>
    %15 = arith.addf %12, %14 : vector<32x32xf32>
    %16 = vector.extract_strided_slice %2 {offsets = [0, 0], sizes = [32, 32], strides = [1, 1]} : vector<32x224xf32> to vector<32x32xf32>
    %cst_5 = arith.constant dense<0.000000e+00> : vector<16x32xf32>
    %17 = tpu.matmul %5, %16, %cst_5 {dimension_numbers = #tpu.dot_dimension_numbers<[1], [0], [0], [1], [0, 0, 1, 1], [], []>} : vector<16x32xf32>, vector<32x32xf32>, vector<16x32xf32> -> vector<16x32xf32>
    %18 = vector.extract_strided_slice %1 {offsets = [0, 96], sizes = [1, 32], strides = [1, 1]} : vector<16x128xf32> to vector<1x32xf32>
    %19 = vector.broadcast %18 : vector<1x32xf32> to vector<16x32xf32>
    %20 = arith.addf %17, %19 : vector<16x32xf32>
    %21 = vector.extract_strided_slice %2 {offsets = [0, 160], sizes = [32, 32], strides = [1, 1]} : vector<32x224xf32> to vector<32x32xf32>
    %cst_6 = arith.constant dense<0.000000e+00> : vector<16x32xf32>
    %22 = tpu.matmul %3, %21, %cst_6 {dimension_numbers = #tpu.dot_dimension_numbers<[1], [0], [0], [1], [0, 0, 1, 1], [], []>} : vector<16x32xf32>, vector<32x32xf32>, vector<16x32xf32> -> vector<16x32xf32>
    %23 = vector.extract_strided_slice %1 {offsets = [6, 96], sizes = [1, 32], strides = [1, 1]} : vector<16x128xf32> to vector<1x32xf32>
    %24 = vector.broadcast %23 : vector<1x32xf32> to vector<16x32xf32>
    %25 = arith.addf %22, %24 : vector<16x32xf32>
    %cst_7 = arith.constant dense<0.000000e+00> : vector<16x32xf32>
    %26 = tpu.matmul %20, %11, %cst_7 {dimension_numbers = #tpu.dot_dimension_numbers<[1], [1], [0], [0], [0, 0, 1, 0], [], []>} : vector<16x32xf32>, vector<32x32xf32>, vector<16x32xf32> -> vector<16x32xf32>
    %27 = arith.addf %26, %4 : vector<16x32xf32>
    %cst_8 = arith.constant dense<0xFF800000> : vector<16xf32>
    %28 = vector.multi_reduction <maximumf>, %27, %cst_8 [1] : vector<16x32xf32> to vector<16xf32>
    %29 = vector.shape_cast %28 : vector<16xf32> to vector<16x1xf32>
    %30 = vector.broadcast %29 : vector<16x1xf32> to vector<16x32xf32>
    %31 = arith.subf %27, %30 : vector<16x32xf32>
    %32 = math.exp %31 : vector<16x32xf32>
    %cst_9 = arith.constant dense<0.000000e+00> : vector<16xf32>
    %33 = vector.multi_reduction <add>, %32, %cst_9 [1] : vector<16x32xf32> to vector<16xf32>
    %34 = vector.shape_cast %33 : vector<16xf32> to vector<16x1xf32>
    %35 = vector.broadcast %34 : vector<16x1xf32> to vector<16x32xf32>
    %36 = arith.divf %32, %35 : vector<16x32xf32>
    %cst_10 = arith.constant dense<0.000000e+00> : vector<16x32xf32>
    %37 = tpu.matmul %36, %15, %cst_10 {dimension_numbers = #tpu.dot_dimension_numbers<[1], [0], [0], [1], [0, 0, 1, 1], [], []>} : vector<16x32xf32>, vector<32x32xf32>, vector<16x32xf32> -> vector<16x32xf32>
    %38 = vector.extract_strided_slice %2 {offsets = [0, 96], sizes = [32, 32], strides = [1, 1]} : vector<32x224xf32> to vector<32x32xf32>
    %cst_11 = arith.constant dense<0.000000e+00> : vector<16x32xf32>
    %39 = tpu.matmul %37, %38, %cst_11 {dimension_numbers = #tpu.dot_dimension_numbers<[1], [0], [0], [1], [0, 0, 1, 1], [], []>} : vector<16x32xf32>, vector<32x32xf32>, vector<16x32xf32> -> vector<16x32xf32>
    %40 = vector.extract_strided_slice %1 {offsets = [3, 96], sizes = [1, 32], strides = [1, 1]} : vector<16x128xf32> to vector<1x32xf32>
    %41 = vector.broadcast %40 : vector<1x32xf32> to vector<16x32xf32>
    %42 = arith.addf %39, %41 : vector<16x32xf32>
    %43 = vector.extract_strided_slice %1 {offsets = [4, 96], sizes = [1, 32], strides = [1, 1]} : vector<16x128xf32> to vector<1x32xf32>
    %44 = vector.extract_strided_slice %1 {offsets = [5, 96], sizes = [1, 32], strides = [1, 1]} : vector<16x128xf32> to vector<1x32xf32>
    %cst_12 = arith.constant dense<0.000000e+00> : vector<16xf32>
    %45 = vector.multi_reduction <add>, %42, %cst_12 [1] : vector<16x32xf32> to vector<16xf32>
    %46 = vector.shape_cast %45 : vector<16xf32> to vector<16x1xf32>
    %cst_13 = arith.constant 3.200000e+01 : f32
    %47 = vector.broadcast %cst_13 : f32 to vector<16x1xf32>
    %48 = arith.divf %46, %47 : vector<16x1xf32>
    %49 = vector.broadcast %48 : vector<16x1xf32> to vector<16x32xf32>
    %50 = arith.subf %42, %49 : vector<16x32xf32>
    %51 = arith.mulf %50, %50 : vector<16x32xf32>
    %cst_14 = arith.constant dense<0.000000e+00> : vector<16xf32>
    %52 = vector.multi_reduction <add>, %51, %cst_14 [1] : vector<16x32xf32> to vector<16xf32>
    %53 = vector.shape_cast %52 : vector<16xf32> to vector<16x1xf32>
    %cst_15 = arith.constant 3.200000e+01 : f32
    %54 = vector.broadcast %cst_15 : f32 to vector<16x1xf32>
    %55 = arith.divf %53, %54 : vector<16x1xf32>
    %56 = vector.broadcast %48 : vector<16x1xf32> to vector<16x32xf32>
    %57 = arith.subf %42, %56 : vector<16x32xf32>
    %cst_16 = arith.constant 9.99999974E-6 : f32
    %58 = vector.broadcast %cst_16 : f32 to vector<16x1xf32>
    %59 = arith.addf %55, %58 : vector<16x1xf32>
    %60 = math.rsqrt %59 : vector<16x1xf32>
    %61 = vector.broadcast %60 : vector<16x1xf32> to vector<16x32xf32>
    %62 = arith.mulf %57, %61 : vector<16x32xf32>
    %63 = vector.broadcast %43 : vector<1x32xf32> to vector<16x32xf32>
    %64 = arith.mulf %62, %63 : vector<16x32xf32>
    %65 = vector.broadcast %44 : vector<1x32xf32> to vector<16x32xf32>
    %66 = arith.addf %64, %65 : vector<16x32xf32>
    %67 = arith.addf %5, %66 : vector<16x32xf32>
    %68 = vector.extract_strided_slice %2 {offsets = [0, 128], sizes = [32, 32], strides = [1, 1]} : vector<32x224xf32> to vector<32x32xf32>
    %cst_17 = arith.constant dense<0.000000e+00> : vector<16x32xf32>
    %69 = tpu.matmul %67, %68, %cst_17 {dimension_numbers = #tpu.dot_dimension_numbers<[1], [0], [0], [1], [0, 0, 1, 1], [], []>} : vector<16x32xf32>, vector<32x32xf32>, vector<16x32xf32> -> vector<16x32xf32>
    %70 = arith.addf %69, %25 : vector<16x32xf32>
    %71 = vector.extract_strided_slice %1 {offsets = [7, 96], sizes = [1, 32], strides = [1, 1]} : vector<16x128xf32> to vector<1x32xf32>
    %72 = vector.extract_strided_slice %1 {offsets = [8, 96], sizes = [1, 32], strides = [1, 1]} : vector<16x128xf32> to vector<1x32xf32>
    %cst_18 = arith.constant dense<0.000000e+00> : vector<16xf32>
    %73 = vector.multi_reduction <add>, %70, %cst_18 [1] : vector<16x32xf32> to vector<16xf32>
    %74 = vector.shape_cast %73 : vector<16xf32> to vector<16x1xf32>
    %cst_19 = arith.constant 3.200000e+01 : f32
    %75 = vector.broadcast %cst_19 : f32 to vector<16x1xf32>
    %76 = arith.divf %74, %75 : vector<16x1xf32>
    %77 = vector.broadcast %76 : vector<16x1xf32> to vector<16x32xf32>
    %78 = arith.subf %70, %77 : vector<16x32xf32>
    %79 = arith.mulf %78, %78 : vector<16x32xf32>
    %cst_20 = arith.constant dense<0.000000e+00> : vector<16xf32>
    %80 = vector.multi_reduction <add>, %79, %cst_20 [1] : vector<16x32xf32> to vector<16xf32>
    %81 = vector.shape_cast %80 : vector<16xf32> to vector<16x1xf32>
    %cst_21 = arith.constant 3.200000e+01 : f32
    %82 = vector.broadcast %cst_21 : f32 to vector<16x1xf32>
    %83 = arith.divf %81, %82 : vector<16x1xf32>
    %84 = vector.broadcast %76 : vector<16x1xf32> to vector<16x32xf32>
    %85 = arith.subf %70, %84 : vector<16x32xf32>
    %cst_22 = arith.constant 9.99999974E-6 : f32
    %86 = vector.broadcast %cst_22 : f32 to vector<16x1xf32>
    %87 = arith.addf %83, %86 : vector<16x1xf32>
    %88 = math.rsqrt %87 : vector<16x1xf32>
    %89 = vector.broadcast %88 : vector<16x1xf32> to vector<16x32xf32>
    %90 = arith.mulf %85, %89 : vector<16x32xf32>
    %91 = vector.broadcast %71 : vector<1x32xf32> to vector<16x32xf32>
    %92 = arith.mulf %90, %91 : vector<16x32xf32>
    %93 = vector.broadcast %72 : vector<1x32xf32> to vector<16x32xf32>
    %94 = arith.addf %92, %93 : vector<16x32xf32>
    %cst_23 = arith.constant 0.000000e+00 : f32
    %95 = vector.broadcast %cst_23 : f32 to vector<16x32xf32>
    %96 = arith.maximumf %94, %95 : vector<16x32xf32>
    %97 = vector.extract_strided_slice %2 {offsets = [0, 192], sizes = [32, 32], strides = [1, 1]} : vector<32x224xf32> to vector<32x32xf32>
    %cst_24 = arith.constant dense<0.000000e+00> : vector<16x32xf32>
    %98 = tpu.matmul %96, %97, %cst_24 {dimension_numbers = #tpu.dot_dimension_numbers<[1], [0], [0], [1], [0, 0, 1, 1], [], []>} : vector<16x32xf32>, vector<32x32xf32>, vector<16x32xf32> -> vector<16x32xf32>
    %99 = vector.extract_strided_slice %1 {offsets = [9, 96], sizes = [1, 32], strides = [1, 1]} : vector<16x128xf32> to vector<1x32xf32>
    %100 = vector.broadcast %99 : vector<1x32xf32> to vector<16x32xf32>
    %101 = arith.addf %98, %100 : vector<16x32xf32>
    %102 = vector.extract_strided_slice %1 {offsets = [10, 96], sizes = [1, 32], strides = [1, 1]} : vector<16x128xf32> to vector<1x32xf32>
    %103 = vector.extract_strided_slice %1 {offsets = [11, 96], sizes = [1, 32], strides = [1, 1]} : vector<16x128xf32> to vector<1x32xf32>
    %cst_25 = arith.constant dense<0.000000e+00> : vector<16xf32>
    %104 = vector.multi_reduction <add>, %101, %cst_25 [1] : vector<16x32xf32> to vector<16xf32>
    %105 = vector.shape_cast %104 : vector<16xf32> to vector<16x1xf32>
    %cst_26 = arith.constant 3.200000e+01 : f32
    %106 = vector.broadcast %cst_26 : f32 to vector<16x1xf32>
    %107 = arith.divf %105, %106 : vector<16x1xf32>
    %108 = vector.broadcast %107 : vector<16x1xf32> to vector<16x32xf32>
    %109 = arith.subf %101, %108 : vector<16x32xf32>
    %110 = arith.mulf %109, %109 : vector<16x32xf32>
    %cst_27 = arith.constant dense<0.000000e+00> : vector<16xf32>
    %111 = vector.multi_reduction <add>, %110, %cst_27 [1] : vector<16x32xf32> to vector<16xf32>
    %112 = vector.shape_cast %111 : vector<16xf32> to vector<16x1xf32>
    %cst_28 = arith.constant 3.200000e+01 : f32
    %113 = vector.broadcast %cst_28 : f32 to vector<16x1xf32>
    %114 = arith.divf %112, %113 : vector<16x1xf32>
    %115 = vector.broadcast %107 : vector<16x1xf32> to vector<16x32xf32>
    %116 = arith.subf %101, %115 : vector<16x32xf32>
    %cst_29 = arith.constant 9.99999974E-6 : f32
    %117 = vector.broadcast %cst_29 : f32 to vector<16x1xf32>
    %118 = arith.addf %114, %117 : vector<16x1xf32>
    %119 = math.rsqrt %118 : vector<16x1xf32>
    %120 = vector.broadcast %119 : vector<16x1xf32> to vector<16x32xf32>
    %121 = arith.mulf %116, %120 : vector<16x32xf32>
    %122 = vector.broadcast %102 : vector<1x32xf32> to vector<16x32xf32>
    %123 = arith.mulf %121, %122 : vector<16x32xf32>
    %124 = vector.broadcast %103 : vector<1x32xf32> to vector<16x32xf32>
    %125 = arith.addf %123, %124 : vector<16x32xf32>
    %cst_30 = arith.constant 0.000000e+00 : f32
    %126 = vector.broadcast %cst_30 : f32 to vector<16x32xf32>
    %127 = arith.maximumf %125, %126 : vector<16x32xf32>
    %128 = tpu.concatenate %127, %127, %127, %127, %127, %127, %127, %127 in 1 : vector<16x32xf32>, vector<16x32xf32>, vector<16x32xf32>, vector<16x32xf32>, vector<16x32xf32>, vector<16x32xf32>, vector<16x32xf32>, vector<16x32xf32> -> vector<16x256xf32>
    %c0_31 = arith.constant 0 : index
    %c0_32 = arith.constant 0 : index
    %129 = vector.load %arg3[%c0_31, %c0_32] : memref<1x256xf32, #tpu.memory_space<vmem>>, vector<1x256xf32>
    %130 = vector.broadcast %129 : vector<1x256xf32> to vector<16x256xf32>
    %131 = arith.addf %128, %130 : vector<16x256xf32>
    %c0_33 = arith.constant 0 : index
    %c0_34 = arith.constant 0 : index
    %132 = vector.load %arg4[%c0_33, %c0_34] : memref<16x256xf32, #tpu.memory_space<vmem>>, vector<16x256xf32>
    tpu.vector_store %arg4[%c0_33, %c0_34], %131 {strides = array<i32>} : memref<16x256xf32, #tpu.memory_space<vmem>>, vector<16x256xf32>,
    return
  }
}

</mosaic_0001>

<llo_original>
// kernel: tpu_custom_call.1
$region0: #{tpu_custom_call.1}
  #allocation0 [shape = 'u32[]', space=smem, size = 0x4, offset = 0x4, fixed_abs, tag = 'smem constant byte address 0x4 - core index']
  #allocation1 [shape = 'u32[144,128]{1,0:T(1,128)}', space=vmem, size = 0x12000, scoped, tag = 'internal scratch']
  %s0 = inlined_call_operand.hbm [shape: f32[32,32], index: 0, kind: input, shape index: {}]
  %s1 = inlined_call_operand.hbm [shape: f32[16,128], index: 1, kind: input, shape index: {}]
  %s2 = inlined_call_operand.hbm [shape: f32[32,224], index: 2, kind: input, shape index: {}]
  %s3 = inlined_call_operand.vmem [shape: f32[1,256], index: 3, kind: input, shape index: {}]
  %s4 = inlined_call_operand.hbm [shape: f32[16,256], index: 4, kind: output, shape index: {}]
  %s5 = sld [smem:[#allocation0]]
  $region38: #{tpu_custom_call.1} parent=0
    _
  %s7 = ssub.s32 1, %s5
  %s8 = scalar_select 0, %s7, %s5
  $region1: #{tpu_custom_call.1} parent=0
    #allocation2 [shape = 'u8[16384]{0}', space=vmem, size = 0x4000, scoped, tag = 'input window, operand 0, single buffered']
    #allocation3 [shape = 's32[1]{0}', space=sflag, size = 0x4, scoped, tag = 'scoped memory for tpu_custom_call.1']
    #allocation4 [shape = 's32[1]{0}', space=sflag, size = 0x4, scoped, tag = 'scoped memory for tpu_custom_call.1']
    #allocation5 [shape = 'u8[8192]{0}', space=vmem, size = 0x2000, scoped, tag = 'input window, operand 1, single buffered']
    #allocation6 [shape = 's32[1]{0}', space=sflag, size = 0x4, scoped, tag = 'scoped memory for tpu_custom_call.1']
    #allocation7 [shape = 'u8[32768]{0}', space=vmem, size = 0x8000, scoped, tag = 'input window, operand 2, single buffered']
    #allocation8 [shape = 'u8[16384]{0}', space=vmem, size = 0x4000, scoped, tag = 'output window, operand 0, single buffered']
    %9 = vsyncpa [#allocation3], 0
    %10 = vsyncpa [#allocation6], 0
    %11 = vsyncpa [#allocation4], 0
    // Predicated region
    $region2: #{tpu_custom_call.1} parent=1 // pred_check
      _
    $region3: #{tpu_custom_call.1} parent=1 // pred_check_branch
      %13 = sbr.rel (0) target = $region5
    $region4: #{tpu_custom_call.1} parent=1 // pred_region
      %s15 = ssub.s32 512, 512
      %16 = vsyncadd [#allocation3], %s15
      %s17 = sshll.u32 [#allocation2], 4
      %s18 = int_to_ptr.vmem [resolvable:$true] %s17
      %23 = dma.hbm_to_vmem [thread:$0]  %s0, 512, %s18, [#allocation3], 128, 128, 8
    $region5: #{tpu_custom_call.1} parent=1 // pred_fallthru
      _
    // Predicated region
    $region6: #{tpu_custom_call.1} parent=1 // pred_check
      _
    $region7: #{tpu_custom_call.1} parent=1 // pred_check_branch
      %25 = sbr.rel (0) target = $region9
    $region8: #{tpu_custom_call.1} parent=1 // pred_region
      %s27 = ssub.s32 256, 256
      %28 = vsyncadd [#allocation6], %s27
      %s29 = sshll.u32 [#allocation5], 4
      %s30 = int_to_ptr.vmem [resolvable:$true] %s29
      %35 = dma.hbm_to_vmem [thread:$0]  %s1, 256, %s30, [#allocation6], 128, 128, 8
    $region9: #{tpu_custom_call.1} parent=1 // pred_fallthru
      _
    // Predicated region
    $region10: #{tpu_custom_call.1} parent=1 // pred_check
      _
    $region11: #{tpu_custom_call.1} parent=1 // pred_check_branch
      %37 = sbr.rel (0) target = $region13
    $region12: #{tpu_custom_call.1} parent=1 // pred_region
      %s39 = ssub.s32 1024, 1024
      %40 = vsyncadd [#allocation6], %s39
      %s41 = sshll.u32 [#allocation7], 4
      %s42 = int_to_ptr.vmem [resolvable:$true] %s41
      %47 = dma.hbm_to_vmem [thread:$0]  %s2, 1024, %s42, [#allocation6], 256, 256, 16
    $region13: #{tpu_custom_call.1} parent=1 // pred_fallthru
      _
    // Predicated region
    $region14: #{tpu_custom_call.1} parent=1 // pred_check
      _
    $region15: #{tpu_custom_call.1} parent=1 // pred_check_branch
      %49 = sbr.rel (0) target = $region17
    $region16: #{tpu_custom_call.1} parent=1 // pred_region
      _
    $region17: #{tpu_custom_call.1} parent=1 // pred_fallthru
      _
    // Predicated region
    $region18: #{tpu_custom_call.1} parent=1 // pred_check
      _
    $region19: #{tpu_custom_call.1} parent=1 // pred_check_branch
      %51 = sbr.rel (0) target = $region21
    $region20: #{tpu_custom_call.1} parent=1 // pred_region
      %52 = dma.done [#allocation3], 512
    $region21: #{tpu_custom_call.1} parent=1 // pred_fallthru
      _
    // Predicated region
    $region22: #{tpu_custom_call.1} parent=1 // pred_check
      _
    $region23: #{tpu_custom_call.1} parent=1 // pred_check_branch
      %54 = sbr.rel (0) target = $region25
    $region24: #{tpu_custom_call.1} parent=1 // pred_region
      %55 = dma.done [#allocation6], 256
    $region25: #{tpu_custom_call.1} parent=1 // pred_fallthru
      _
    // Predicated region
    $region26: #{tpu_custom_call.1} parent=1 // pred_check
      _
    $region27: #{tpu_custom_call.1} parent=1 // pred_check_branch
      %57 = sbr.rel (0) target = $region29
    $region28: #{tpu_custom_call.1} parent=1 // pred_region
      %58 = dma.done [#allocation6], 1024
    $region29: #{tpu_custom_call.1} parent=1 // pred_fallthru
      _
    %v59 = vld [vmem:[#allocation2] sm:$0xff]
    %v60 = vld [vmem:[#allocation2 + $0x8] sm:$0xff]
    %v61 = vld [vmem:[#allocation2 + $0x10] sm:$0xff]
    %v62 = vld [vmem:[#allocation2 + $0x18] sm:$0xff]
    %v63 = vld [vmem:[#allocation5] sm:$0xff]
    %v64 = vld [vmem:[#allocation5 + $0x8] sm:$0xff]
    %v65 = vld [vmem:[#allocation7] sm:$0xff]
    %v66 = vld [vmem:[#allocation7 + $0x8] sm:$0xff]
    %v67 = vld [vmem:[#allocation7 + $0x10] sm:$0xff]
    %v68 = vld [vmem:[#allocation7 + $0x18] sm:$0xff]
    %v69 = vld [vmem:[#allocation7 + $0x20] sm:$0xff]
    %v70 = vld [vmem:[#allocation7 + $0x28] sm:$0xff]
    %v71 = vld [vmem:[#allocation7 + $0x30] sm:$0xff]
    %v72 = vld [vmem:[#allocation7 + $0x38] sm:$0xff]
    %77 = vrot.lane.b32.xlu0 %v65, 96
    %v78 = vpop.permute.xlu0 %77
    %79 = vrot.lane.b32.xlu0 %v67, 96
    %v80 = vpop.permute.xlu0 %79
    %81 = vrot.lane.b32.xlu0 %v69, 96
    %v82 = vpop.permute.xlu0 %81
    %83 = vrot.lane.b32.xlu0 %v71, 96
    %v84 = vpop.permute.xlu0 %83
    %vm89 = vcmask 261120
    %v91 = vsel %vm89, %v59, 0
    %v94 = vsel %vm89, %v60, 0
    %v97 = vsel %vm89, %v61, 0
    %v100 = vsel %vm89, %v62, 0
    %102 = vmatprep.subr.mxu0 0.0
    %103 = vmatpush1.msra.mxu0 %v78
    %104 = vmatprep.subr.mxu0 0.0
    %105 = vmatpush1.msra.mxu0 %v80
    %106 = vmatprep.subr.mxu0 0.0
    %107 = vmatpush1.msra.mxu0 %v82
    %108 = vmatprep.subr.mxu0 0.0
    %109 = vmatpush1.msra.mxu0 %v84
    %110 = vmatprep.subr.mxu0 0.0
    %111 = vmatpush1.msra.mxu0 0.0
    %112 = vmatprep.subr.mxu0 0.0
    %113 = vmatpush1.msra.mxu0 0.0
    %114 = vmatprep.subr.mxu0 0.0
    %115 = vmatpush1.msra.mxu0 0.0
    %116 = vmatprep.subr.mxu0 0.0
    %117 = vmatpush1.msra.mxu0 0.0
    %118 = vmatprep.subr.mxu0 0.0
    %119 = vmatpush1.msra.mxu0 0.0
    %120 = vmatprep.subr.mxu0 0.0
    %121 = vmatpush1.msra.mxu0 0.0
    %122 = vmatprep.subr.mxu0 0.0
    %123 = vmatpush1.msra.mxu0 0.0
    %124 = vmatprep.subr.mxu0 0.0
    %125 = vmatpush1.msra.mxu0 0.0
    %126 = vmatprep.subr.mxu0 0.0
    %127 = vmatpush1.msra.mxu0 0.0
    %128 = vmatprep.subr.mxu0 0.0
    %129 = vmatpush1.msra.mxu0 0.0
    %130 = vmatprep.subr.mxu0 0.0
    %131 = vmatpush1.msra.mxu0 0.0
    %132 = vmatprep.subr.mxu0 0.0
    %133 = vmatpush1.msra.mxu0 0.0
    %134 = vmatprep.subr.mxu0 0.0
    %135 = vmatpush1.msra.mxu0 0.0
    %136 = vmatprep.subr.mxu0 0.0
    %137 = vmatpush1.msra.mxu0 0.0
    %138 = vmatprep.subr.mxu0 0.0
    %139 = vmatpush1.msra.mxu0 0.0
    %140 = vmatprep.subr.mxu0 0.0
    %141 = vmatpush1.msra.mxu0 0.0
    %142 = vmatprep.subr.mxu0 0.0
    %143 = vmatpush1.msra.mxu0 0.0
    %144 = vmatprep.subr.mxu0 0.0
    %145 = vmatpush1.msra.mxu0 0.0
    %146 = vmatprep.subr.mxu0 0.0
    %147 = vmatpush1.msra.mxu0 0.0
    %148 = vmatprep.subr.mxu0 0.0
    %149 = vmatpush1.msra.mxu0 0.0
    %150 = vmatprep.subr.mxu0 0.0
    %151 = vmatpush1.msra.mxu0 0.0
    %152 = vmatprep.subr.mxu0 0.0
    %153 = vmatpush1.msra.mxu0 0.0
    %154 = vmatprep.subr.mxu0 0.0
    %155 = vmatpush1.msra.mxu0 0.0
    %156 = vmatprep.subr.mxu0 0.0
    %157 = vmatpush1.msra.mxu0 0.0
    %158 = vmatprep.subr.mxu0 0.0
    %159 = vmatpush1.msra.mxu0 0.0
    %160 = vmatprep.subr.mxu0 0.0
    %161 = vmatpush1.msra.mxu0 0.0
    %162 = vmatprep.subr.mxu0 0.0
    %163 = vmatpush1.msra.mxu0 0.0
    %164 = vmatprep.subr.mxu0 0.0
    %165 = vmatpush1.msra.mxu0 0.0
    %166 = vmatprep.mubr.f32.mxu0 0.0
    %167 = vmatmul.mubr.f32.gmra.mrb[0].mxu0 %v91
    %v168 = vpop.f32.mrb[0].mxu0
    %v169 = vadd.f32 0.0, %v168
    %v170 = vpop.f32.mrb[0].mxu0
    %171 = vmatprep.mubr.f32.mxu0 0.0
    %172 = vmatmul.mubr.f32.gmra.mrb[0].mxu0 %v94
    %v173 = vpop.f32.mrb[0].mxu0
    %v174 = vadd.f32 0.0, %v173
    %v175 = vpop.f32.mrb[0].mxu0
    %176 = vmatprep.mubr.f32.mxu0 0.0
    %177 = vmatmul.mubr.f32.gmra.mrb[0].mxu0 %v97
    %v178 = vpop.f32.mrb[0].mxu0
    %v179 = vadd.f32 0.0, %v178
    %v180 = vpop.f32.mrb[0].mxu0
    %181 = vmatprep.mubr.f32.mxu0 0.0
    %182 = vmatmul.mubr.f32.gmra.mrb[0].mxu0 %v100
    %v183 = vpop.f32.mrb[0].mxu0
    %v184 = vadd.f32 0.0, %v183
    %v185 = vpop.f32.mrb[0].mxu0
    %186 = vdwg.mxu0
    %v187 = vlaneseq
    %v188 = vshrl.u32 %v187, 7
    %v189 = vsub.s32 1, %v188
    %v190 = vrot.slane %v63, %v189
    %192 = vrot.lane.b32.xlu0 %v190, 32
    %v193 = vpop.permute.xlu0 %192
    %v195 = vadd.f32 %v169, %v193
    %v196 = vadd.f32 %v174, %v193
    %v197 = vadd.f32 %v179, %v193
    %v198 = vadd.f32 %v184, %v193
    %v199 = vlaneseq
    %v200 = vshrl.u32 %v199, 7
    %v201 = vsub.s32 2, %v200
    %v202 = vrot.slane %v63, %v201
    %204 = vrot.lane.b32.xlu0 %v202, 64
    %v205 = vpop.permute.xlu0 %204
    %v207 = vadd.f32 %v169, %v205
    %v208 = vadd.f32 %v174, %v205
    %v209 = vadd.f32 %v179, %v205
    %v210 = vadd.f32 %v184, %v205
    %v211 = vlaneseq
    %v212 = vshrl.u32 %v211, 7
    %v213 = vsub.s32 0, %v212
    %v214 = vrot.slane %v63, %v213
    %217 = vrot.lane.b32.xlu0 %v63, 64
    %v218 = vpop.permute.xlu0 %217
    %219 = vrot.lane.b32.xlu0 %v64, 64
    %v220 = vpop.permute.xlu0 %219
    %222 = vrot.lane.b32.xlu0 %v214, 32
    %v223 = vpop.permute.xlu0 %222
    %v225 = vsel %vm89, %v218, 0
    %v227 = vsel %vm89, %v220, 0
    %229 = vmatprep.subr.mxu0 0.0
    %230 = vmatpush1.msra.mxu0 %v65
    %231 = vmatprep.subr.mxu0 0.0
    %232 = vmatpush1.msra.mxu0 %v67
    %233 = vmatprep.subr.mxu0 0.0
    %234 = vmatpush1.msra.mxu0 %v69
    %235 = vmatprep.subr.mxu0 0.0
    %236 = vmatpush1.msra.mxu0 %v71
    %237 = vmatprep.subr.mxu0 0.0
    %238 = vmatpush1.msra.mxu0 0.0
    %239 = vmatprep.subr.mxu0 0.0
    %240 = vmatpush1.msra.mxu0 0.0
    %241 = vmatprep.subr.mxu0 0.0
    %242 = vmatpush1.msra.mxu0 0.0
    %243 = vmatprep.subr.mxu0 0.0
    %244 = vmatpush1.msra.mxu0 0.0
    %245 = vmatprep.subr.mxu0 0.0
    %246 = vmatpush1.msra.mxu0 0.0
    %247 = vmatprep.subr.mxu0 0.0
    %248 = vmatpush1.msra.mxu0 0.0
    %249 = vmatprep.subr.mxu0 0.0
    %250 = vmatpush1.msra.mxu0 0.0
    %251 = vmatprep.subr.mxu0 0.0
    %252 = vmatpush1.msra.mxu0 0.0
    %253 = vmatprep.subr.mxu0 0.0
    %254 = vmatpush1.msra.mxu0 0.0
    %255 = vmatprep.subr.mxu0 0.0
    %256 = vmatpush1.msra.mxu0 0.0
    %257 = vmatprep.subr.mxu0 0.0
    %258 = vmatpush1.msra.mxu0 0.0
    %259 = vmatprep.subr.mxu0 0.0
    %260 = vmatpush1.msra.mxu0 0.0
    %261 = vmatprep.subr.mxu0 0.0
    %262 = vmatpush1.msra.mxu0 0.0
    %263 = vmatprep.subr.mxu0 0.0
    %264 = vmatpush1.msra.mxu0 0.0
    %265 = vmatprep.subr.mxu0 0.0
    %266 = vmatpush1.msra.mxu0 0.0
    %267 = vmatprep.subr.mxu0 0.0
    %268 = vmatpush1.msra.mxu0 0.0
    %269 = vmatprep.subr.mxu0 0.0
    %270 = vmatpush1.msra.mxu0 0.0
    %271 = vmatprep.subr.mxu0 0.0
    %272 = vmatpush1.msra.mxu0 0.0
    %273 = vmatprep.subr.mxu0 0.0
    %274 = vmatpush1.msra.mxu0 0.0
    %275 = vmatprep.subr.mxu0 0.0
    %276 = vmatpush1.msra.mxu0 0.0
    %277 = vmatprep.subr.mxu0 0.0
    %278 = vmatpush1.msra.mxu0 0.0
    %279 = vmatprep.subr.mxu0 0.0
    %280 = vmatpush1.msra.mxu0 0.0
    %281 = vmatprep.subr.mxu0 0.0
    %282 = vmatpush1.msra.mxu0 0.0
    %283 = vmatprep.subr.mxu0 0.0
    %284 = vmatpush1.msra.mxu0 0.0
    %285 = vmatprep.subr.mxu0 0.0
    %286 = vmatpush1.msra.mxu0 0.0
    %287 = vmatprep.subr.mxu0 0.0
    %288 = vmatpush1.msra.mxu0 0.0
    %289 = vmatprep.subr.mxu0 0.0
    %290 = vmatpush1.msra.mxu0 0.0
    %291 = vmatprep.subr.mxu0 0.0
    %292 = vmatpush1.msra.mxu0 0.0
    %293 = vmatprep.mubr.f32.mxu0 0.0
    %294 = vmatmul.mubr.f32.gmra.mrb[0].mxu0 %v225
    %v295 = vpop.f32.mrb[0].mxu0
    %v296 = vadd.f32 %v223, %v295
    %v297 = vpop.f32.mrb[0].mxu0
    %298 = vmatprep.mubr.f32.mxu0 0.0
    %299 = vmatmul.mubr.f32.gmra.mrb[0].mxu0 %v227
    %v300 = vpop.f32.mrb[0].mxu0
    %v301 = vadd.f32 %v223, %v300
    %v302 = vpop.f32.mrb[0].mxu0
    %303 = vdwg.mxu0
    %v304 = vlaneseq
    %v305 = vshrl.u32 %v304, 7
    %v306 = vsub.s32 6, %v305
    %v307 = vrot.slane %v63, %v306
    %312 = vrot.lane.b32.xlu0 %v66, 96
    %v313 = vpop.permute.xlu0 %312
    %314 = vrot.lane.b32.xlu0 %v68, 96
    %v315 = vpop.permute.xlu0 %314
    %316 = vrot.lane.b32.xlu0 %v70, 96
    %v317 = vpop.permute.xlu0 %316
    %318 = vrot.lane.b32.xlu0 %v72, 96
    %v319 = vpop.permute.xlu0 %318
    %325 = vrot.lane.b32.xlu0 %v307, 32
    %v326 = vpop.permute.xlu0 %325
    %v328 = vsel %vm89, %v63, 0
    %v330 = vsel %vm89, %v64, 0
    %332 = vmatprep.subr.mxu0 0.0
    %333 = vmatpush1.msra.mxu0 %v313
    %334 = vmatprep.subr.mxu0 0.0
    %335 = vmatpush1.msra.mxu0 %v315
    %336 = vmatprep.subr.mxu0 0.0
    %337 = vmatpush1.msra.mxu0 %v317
    %338 = vmatprep.subr.mxu0 0.0
    %339 = vmatpush1.msra.mxu0 %v319
    %340 = vmatprep.subr.mxu0 0.0
    %341 = vmatpush1.msra.mxu0 0.0
    %342 = vmatprep.subr.mxu0 0.0
    %343 = vmatpush1.msra.mxu0 0.0
    %344 = vmatprep.subr.mxu0 0.0
    %345 = vmatpush1.msra.mxu0 0.0
    %346 = vmatprep.subr.mxu0 0.0
    %347 = vmatpush1.msra.mxu0 0.0
    %348 = vmatprep.subr.mxu0 0.0
    %349 = vmatpush1.msra.mxu0 0.0
    %350 = vmatprep.subr.mxu0 0.0
    %351 = vmatpush1.msra.mxu0 0.0
    %352 = vmatprep.subr.mxu0 0.0
    %353 = vmatpush1.msra.mxu0 0.0
    %354 = vmatprep.subr.mxu0 0.0
    %355 = vmatpush1.msra.mxu0 0.0
    %356 = vmatprep.subr.mxu0 0.0
    %357 = vmatpush1.msra.mxu0 0.0
    %358 = vmatprep.subr.mxu0 0.0
    %359 = vmatpush1.msra.mxu0 0.0
    %360 = vmatprep.subr.mxu0 0.0
    %361 = vmatpush1.msra.mxu0 0.0
    %362 = vmatprep.subr.mxu0 0.0
    %363 = vmatpush1.msra.mxu0 0.0
    %364 = vmatprep.subr.mxu0 0.0
    %365 = vmatpush1.msra.mxu0 0.0
    %366 = vmatprep.subr.mxu0 0.0
    %367 = vmatpush1.msra.mxu0 0.0
    %368 = vmatprep.subr.mxu0 0.0
    %369 = vmatpush1.msra.mxu0 0.0
    %370 = vmatprep.subr.mxu0 0.0
    %371 = vmatpush1.msra.mxu0 0.0
    %372 = vmatprep.subr.mxu0 0.0
    %373 = vmatpush1.msra.mxu0 0.0
    %374 = vmatprep.subr.mxu0 0.0
    %375 = vmatpush1.msra.mxu0 0.0
    %376 = vmatprep.subr.mxu0 0.0
    %377 = vmatpush1.msra.mxu0 0.0
    %378 = vmatprep.subr.mxu0 0.0
    %379 = vmatpush1.msra.mxu0 0.0
    %380 = vmatprep.subr.mxu0 0.0
    %381 = vmatpush1.msra.mxu0 0.0
    %382 = vmatprep.subr.mxu0 0.0
    %383 = vmatpush1.msra.mxu0 0.0
    %384 = vmatprep.subr.mxu0 0.0
    %385 = vmatpush1.msra.mxu0 0.0
    %386 = vmatprep.subr.mxu0 0.0
    %387 = vmatpush1.msra.mxu0 0.0
    %388 = vmatprep.subr.mxu0 0.0
    %389 = vmatpush1.msra.mxu0 0.0
    %390 = vmatprep.subr.mxu0 0.0
    %391 = vmatpush1.msra.mxu0 0.0
    %392 = vmatprep.subr.mxu0 0.0
    %393 = vmatpush1.msra.mxu0 0.0
    %394 = vmatprep.subr.mxu0 0.0
    %395 = vmatpush1.msra.mxu0 0.0
    %396 = vmatprep.mubr.f32.mxu0 0.0
    %397 = vmatmul.mubr.f32.gmra.mrb[0].mxu0 %v328
    %v398 = vpop.f32.mrb[0].mxu0
    %v399 = vadd.f32 %v326, %v398
    %v400 = vpop.f32.mrb[0].mxu0
    %401 = vmatprep.mubr.f32.mxu0 0.0
    %402 = vmatmul.mubr.f32.gmra.mrb[0].mxu0 %v330
    %v403 = vpop.f32.mrb[0].mxu0
    %v404 = vadd.f32 %v326, %v403
    %v405 = vpop.f32.mrb[0].mxu0
    %406 = vdwg.mxu0
    %407 = vrot.lane.b32.xlu0 %v63, 96
    %v408 = vpop.permute.xlu0 %407
    %409 = vrot.lane.b32.xlu0 %v64, 96
    %v410 = vpop.permute.xlu0 %409
    %v414 = vsel %vm89, %v296, 0
    %v417 = vsel %vm89, %v301, 0
    %v420 = vsel %vm89, %v195, 0
    %v423 = vsel %vm89, %v196, 0
    %v426 = vsel %vm89, %v197, 0
    %v429 = vsel %vm89, %v198, 0
    %431 = vmatprep.subr.mxu0 0.0
    %432 = vmatpush1.xpose.msra.mxu0 %v420
    %433 = vmatprep.subr.mxu0 0.0
    %434 = vmatpush1.xpose.msra.mxu0 %v423
    %435 = vmatprep.subr.mxu0 0.0
    %436 = vmatpush1.xpose.msra.mxu0 %v426
    %437 = vmatprep.subr.mxu0 0.0
    %438 = vmatpush1.xpose.msra.mxu0 %v429
    %439 = vmatprep.subr.mxu0 0.0
    %440 = vmatpush1.xpose.msra.mxu0 0.0
    %441 = vmatprep.subr.mxu0 0.0
    %442 = vmatpush1.xpose.msra.mxu0 0.0
    %443 = vmatprep.subr.mxu0 0.0
    %444 = vmatpush1.xpose.msra.mxu0 0.0
    %445 = vmatprep.subr.mxu0 0.0
    %446 = vmatpush1.xpose.msra.mxu0 0.0
    %447 = vmatprep.subr.mxu0 0.0
    %448 = vmatpush1.xpose.msra.mxu0 0.0
    %449 = vmatprep.subr.mxu0 0.0
    %450 = vmatpush1.xpose.msra.mxu0 0.0
    %451 = vmatprep.subr.mxu0 0.0
    %452 = vmatpush1.xpose.msra.mxu0 0.0
    %453 = vmatprep.subr.mxu0 0.0
    %454 = vmatpush1.xpose.msra.mxu0 0.0
    %455 = vmatprep.subr.mxu0 0.0
    %456 = vmatpush1.xpose.msra.mxu0 0.0
    %457 = vmatprep.subr.mxu0 0.0
    %458 = vmatpush1.xpose.msra.mxu0 0.0
    %459 = vmatprep.subr.mxu0 0.0
    %460 = vmatpush1.xpose.msra.mxu0 0.0
    %461 = vmatprep.subr.mxu0 0.0
    %462 = vmatpush1.xpose.msra.mxu0 0.0
    %463 = vmatprep.subr.mxu0 0.0
    %464 = vmatpush1.xpose.msra.mxu0 0.0
    %465 = vmatprep.subr.mxu0 0.0
    %466 = vmatpush1.xpose.msra.mxu0 0.0
    %467 = vmatprep.subr.mxu0 0.0
    %468 = vmatpush1.xpose.msra.mxu0 0.0
    %469 = vmatprep.subr.mxu0 0.0
    %470 = vmatpush1.xpose.msra.mxu0 0.0
    %471 = vmatprep.subr.mxu0 0.0
    %472 = vmatpush1.xpose.msra.mxu0 0.0
    %473 = vmatprep.subr.mxu0 0.0
    %474 = vmatpush1.xpose.msra.mxu0 0.0
    %475 = vmatprep.subr.mxu0 0.0
    %476 = vmatpush1.xpose.msra.mxu0 0.0
    %477 = vmatprep.subr.mxu0 0.0
    %478 = vmatpush1.xpose.msra.mxu0 0.0
    %479 = vmatprep.subr.mxu0 0.0
    %480 = vmatpush1.xpose.msra.mxu0 0.0
    %481 = vmatprep.subr.mxu0 0.0
    %482 = vmatpush1.xpose.msra.mxu0 0.0
    %483 = vmatprep.subr.mxu0 0.0
    %484 = vmatpush1.xpose.msra.mxu0 0.0
    %485 = vmatprep.subr.mxu0 0.0
    %486 = vmatpush1.xpose.msra.mxu0 0.0
    %487 = vmatprep.subr.mxu0 0.0
    %488 = vmatpush1.xpose.msra.mxu0 0.0
    %489 = vmatprep.subr.mxu0 0.0
    %490 = vmatpush1.xpose.msra.mxu0 0.0
    %491 = vmatprep.subr.mxu0 0.0
    %492 = vmatpush1.xpose.msra.mxu0 0.0
    %493 = vmatprep.subr.mxu0 0.0
    %494 = vmatpush1.xpose.msra.mxu0 0.0
    %495 = vmatprep.mubr.f32.mxu0 0.0
    %496 = vmatmul.mubr.f32.gmra.mrb[0].mxu0 %v414
    %v497 = vpop.f32.mrb[0].mxu0
    %v498 = vadd.f32 %v408, %v497
    %v499 = vpop.f32.mrb[0].mxu0
    %500 = vmatprep.mubr.f32.mxu0 0.0
    %501 = vmatmul.mubr.f32.gmra.mrb[0].mxu0 %v417
    %v502 = vpop.f32.mrb[0].mxu0
    %v503 = vadd.f32 %v410, %v502
    %v504 = vpop.f32.mrb[0].mxu0
    %505 = vdwg.mxu0
    %v506 = vsel %vm89, %v498, -inf
    %507 = vmax.xlane.f32.xlu0 %v506
    %v508 = vpop.xlane.xlu0 %507
    %v509 = vsel %vm89, %v503, -inf
    %510 = vmax.xlane.f32.xlu0 %v509
    %v511 = vpop.xlane.xlu0 %510
    %v512 = vsub.f32 %v498, %v508
    %v513 = vsub.f32 %v503, %v511
    %v514 = vmul.f32 %v512, 1.442695
    %v515 = vpow.pop %v514
    %v516 = vmul.f32 %v513, 1.442695
    %v517 = vpow.pop %v516
    %v518 = vsel %vm89, %v515, 0.0
    %519 = vadd.xlane.f32.xlu0 %v518
    %v520 = vpop.xlane.xlu0 %519
    %v521 = vsel %vm89, %v517, 0.0
    %522 = vadd.xlane.f32.xlu0 %v521
    %v523 = vpop.xlane.xlu0 %522
    %v524 = vrcp.pop %v520
    %v525 = vmul.f32 %v515, %v524
    %v526 = vrcp.pop %v523
    %v527 = vmul.f32 %v517, %v526
    %532 = vrot.lane.b32.xlu0 %v207, 96
    %v533 = vpop.permute.xlu0 %532
    %534 = vrot.lane.b32.xlu0 %v208, 96
    %v535 = vpop.permute.xlu0 %534
    %536 = vrot.lane.b32.xlu0 %v209, 96
    %v537 = vpop.permute.xlu0 %536
    %538 = vrot.lane.b32.xlu0 %v210, 96
    %v539 = vpop.permute.xlu0 %538
    %v545 = vsel %vm89, %v525, 0
    %v548 = vsel %vm89, %v527, 0
    %550 = vmatprep.subr.mxu0 0.0
    %551 = vmatpush1.msra.mxu0 %v533
    %552 = vmatprep.subr.mxu0 0.0
    %553 = vmatpush1.msra.mxu0 %v535
    %554 = vmatprep.subr.mxu0 0.0
    %555 = vmatpush1.msra.mxu0 %v537
    %556 = vmatprep.subr.mxu0 0.0
    %557 = vmatpush1.msra.mxu0 %v539
    %558 = vmatprep.subr.mxu0 0.0
    %559 = vmatpush1.msra.mxu0 0.0
    %560 = vmatprep.subr.mxu0 0.0
    %561 = vmatpush1.msra.mxu0 0.0
    %562 = vmatprep.subr.mxu0 0.0
    %563 = vmatpush1.msra.mxu0 0.0
    %564 = vmatprep.subr.mxu0 0.0
    %565 = vmatpush1.msra.mxu0 0.0
    %566 = vmatprep.subr.mxu0 0.0
    %567 = vmatpush1.msra.mxu0 0.0
    %568 = vmatprep.subr.mxu0 0.0
    %569 = vmatpush1.msra.mxu0 0.0
    %570 = vmatprep.subr.mxu0 0.0
    %571 = vmatpush1.msra.mxu0 0.0
    %572 = vmatprep.subr.mxu0 0.0
    %573 = vmatpush1.msra.mxu0 0.0
    %574 = vmatprep.subr.mxu0 0.0
    %575 = vmatpush1.msra.mxu0 0.0
    %576 = vmatprep.subr.mxu0 0.0
    %577 = vmatpush1.msra.mxu0 0.0
    %578 = vmatprep.subr.mxu0 0.0
    %579 = vmatpush1.msra.mxu0 0.0
    %580 = vmatprep.subr.mxu0 0.0
    %581 = vmatpush1.msra.mxu0 0.0
    %582 = vmatprep.subr.mxu0 0.0
    %583 = vmatpush1.msra.mxu0 0.0
    %584 = vmatprep.subr.mxu0 0.0
    %585 = vmatpush1.msra.mxu0 0.0
    %586 = vmatprep.subr.mxu0 0.0
    %587 = vmatpush1.msra.mxu0 0.0
    %588 = vmatprep.subr.mxu0 0.0
    %589 = vmatpush1.msra.mxu0 0.0
    %590 = vmatprep.subr.mxu0 0.0
    %591 = vmatpush1.msra.mxu0 0.0
    %592 = vmatprep.subr.mxu0 0.0
    %593 = vmatpush1.msra.mxu0 0.0
    %594 = vmatprep.subr.mxu0 0.0
    %595 = vmatpush1.msra.mxu0 0.0
    %596 = vmatprep.subr.mxu0 0.0
    %597 = vmatpush1.msra.mxu0 0.0
    %598 = vmatprep.subr.mxu0 0.0
    %599 = vmatpush1.msra.mxu0 0.0
    %600 = vmatprep.subr.mxu0 0.0
    %601 = vmatpush1.msra.mxu0 0.0
    %602 = vmatprep.subr.mxu0 0.0
    %603 = vmatpush1.msra.mxu0 0.0
    %604 = vmatprep.subr.mxu0 0.0
    %605 = vmatpush1.msra.mxu0 0.0
    %606 = vmatprep.subr.mxu0 0.0
    %607 = vmatpush1.msra.mxu0 0.0
    %608 = vmatprep.subr.mxu0 0.0
    %609 = vmatpush1.msra.mxu0 0.0
    %610 = vmatprep.subr.mxu0 0.0
    %611 = vmatpush1.msra.mxu0 0.0
    %612 = vmatprep.subr.mxu0 0.0
    %613 = vmatpush1.msra.mxu0 0.0
    %614 = vmatprep.mubr.f32.mxu0 0.0
    %615 = vmatmul.mubr.f32.gmra.mrb[0].mxu0 %v545
    %v616 = vpop.f32.mrb[0].mxu0
    %v617 = vadd.f32 0.0, %v616
    %v618 = vpop.f32.mrb[0].mxu0
    %619 = vmatprep.mubr.f32.mxu0 0.0
    %620 = vmatmul.mubr.f32.gmra.mrb[0].mxu0 %v548
    %v621 = vpop.f32.mrb[0].mxu0
    %v622 = vadd.f32 0.0, %v621
    %v623 = vpop.f32.mrb[0].mxu0
    %624 = vdwg.mxu0
    %v625 = vlaneseq
    %v626 = vshrl.u32 %v625, 7
    %v627 = vsub.s32 3, %v626
    %v628 = vrot.slane %v63, %v627
    %629 = vrot.lane.b32.xlu0 %v65, 32
    %v630 = vpop.permute.xlu0 %629
    %631 = vrot.lane.b32.xlu0 %v67, 32
    %v632 = vpop.permute.xlu0 %631
    %633 = vrot.lane.b32.xlu0 %v69, 32
    %v634 = vpop.permute.xlu0 %633
    %635 = vrot.lane.b32.xlu0 %v71, 32
    %v636 = vpop.permute.xlu0 %635
    %642 = vrot.lane.b32.xlu0 %v628, 32
    %v643 = vpop.permute.xlu0 %642
    %v646 = vsel %vm89, %v617, 0
    %v649 = vsel %vm89, %v622, 0
    %651 = vmatprep.subr.mxu0 0.0
    %652 = vmatpush1.msra.mxu0 %v630
    %653 = vmatprep.subr.mxu0 0.0
    %654 = vmatpush1.msra.mxu0 %v632
    %655 = vmatprep.subr.mxu0 0.0
    %656 = vmatpush1.msra.mxu0 %v634
    %657 = vmatprep.subr.mxu0 0.0
    %658 = vmatpush1.msra.mxu0 %v636
    %659 = vmatprep.subr.mxu0 0.0
    %660 = vmatpush1.msra.mxu0 0.0
    %661 = vmatprep.subr.mxu0 0.0
    %662 = vmatpush1.msra.mxu0 0.0
    %663 = vmatprep.subr.mxu0 0.0
    %664 = vmatpush1.msra.mxu0 0.0
    %665 = vmatprep.subr.mxu0 0.0
    %666 = vmatpush1.msra.mxu0 0.0
    %667 = vmatprep.subr.mxu0 0.0
    %668 = vmatpush1.msra.mxu0 0.0
    %669 = vmatprep.subr.mxu0 0.0
    %670 = vmatpush1.msra.mxu0 0.0
    %671 = vmatprep.subr.mxu0 0.0
    %672 = vmatpush1.msra.mxu0 0.0
    %673 = vmatprep.subr.mxu0 0.0
    %674 = vmatpush1.msra.mxu0 0.0
    %675 = vmatprep.subr.mxu0 0.0
    %676 = vmatpush1.msra.mxu0 0.0
    %677 = vmatprep.subr.mxu0 0.0
    %678 = vmatpush1.msra.mxu0 0.0
    %679 = vmatprep.subr.mxu0 0.0
    %680 = vmatpush1.msra.mxu0 0.0
    %681 = vmatprep.subr.mxu0 0.0
    %682 = vmatpush1.msra.mxu0 0.0
    %683 = vmatprep.subr.mxu0 0.0
    %684 = vmatpush1.msra.mxu0 0.0
    %685 = vmatprep.subr.mxu0 0.0
    %686 = vmatpush1.msra.mxu0 0.0
    %687 = vmatprep.subr.mxu0 0.0
    %688 = vmatpush1.msra.mxu0 0.0
    %689 = vmatprep.subr.mxu0 0.0
    %690 = vmatpush1.msra.mxu0 0.0
    %691 = vmatprep.subr.mxu0 0.0
    %692 = vmatpush1.msra.mxu0 0.0
    %693 = vmatprep.subr.mxu0 0.0
    %694 = vmatpush1.msra.mxu0 0.0
    %695 = vmatprep.subr.mxu0 0.0
    %696 = vmatpush1.msra.mxu0 0.0
    %697 = vmatprep.subr.mxu0 0.0
    %698 = vmatpush1.msra.mxu0 0.0
    %699 = vmatprep.subr.mxu0 0.0
    %700 = vmatpush1.msra.mxu0 0.0
    %701 = vmatprep.subr.mxu0 0.0
    %702 = vmatpush1.msra.mxu0 0.0
    %703 = vmatprep.subr.mxu0 0.0
    %704 = vmatpush1.msra.mxu0 0.0
    %705 = vmatprep.subr.mxu0 0.0
    %706 = vmatpush1.msra.mxu0 0.0
    %707 = vmatprep.subr.mxu0 0.0
    %708 = vmatpush1.msra.mxu0 0.0
    %709 = vmatprep.subr.mxu0 0.0
    %710 = vmatpush1.msra.mxu0 0.0
    %711 = vmatprep.subr.mxu0 0.0
    %712 = vmatpush1.msra.mxu0 0.0
    %713 = vmatprep.subr.mxu0 0.0
    %714 = vmatpush1.msra.mxu0 0.0
    %715 = vmatprep.mubr.f32.mxu0 0.0
    %716 = vmatmul.mubr.f32.gmra.mrb[0].mxu0 %v646
    %v717 = vpop.f32.mrb[0].mxu0
    %v718 = vadd.f32 %v643, %v717
    %v719 = vpop.f32.mrb[0].mxu0
    %720 = vmatprep.mubr.f32.mxu0 0.0
    %721 = vmatmul.mubr.f32.gmra.mrb[0].mxu0 %v649
    %v722 = vpop.f32.mrb[0].mxu0
    %v723 = vadd.f32 %v643, %v722
    %v724 = vpop.f32.mrb[0].mxu0
    %725 = vdwg.mxu0
    %v726 = vsel %vm89, %v718, 0.0
    %727 = vadd.xlane.f32.xlu0 %v726
    %v728 = vpop.xlane.xlu0 %727
    %v729 = vsel %vm89, %v723, 0.0
    %730 = vadd.xlane.f32.xlu0 %v729
    %v731 = vpop.xlane.xlu0 %730
    %v732 = vrcp.pop 32.0
    %v733 = vmul.f32 %v728, %v732
    %v734 = vmul.f32 %v731, %v732
    %v735 = vsub.f32 %v718, %v733
    %v736 = vsub.f32 %v723, %v734
    %v737 = vmul.f32 %v735, %v735
    %v738 = vmul.f32 %v736, %v736
    %v739 = vsel %vm89, %v737, 0.0
    %740 = vadd.xlane.f32.xlu0 %v739
    %v741 = vpop.xlane.xlu0 %740
    %v742 = vsel %vm89, %v738, 0.0
    %743 = vadd.xlane.f32.xlu0 %v742
    %v744 = vpop.xlane.xlu0 %743
    %v745 = vmul.f32 %v741, %v732
    %v746 = vmul.f32 %v744, %v732
    %v747 = vadd.f32 %v745, 1e-05
    %v748 = vadd.f32 %v746, 1e-05
    %v749 = vrsqrt.pop %v747
    %v750 = vrsqrt.pop %v748
    %v751 = vmul.f32 %v735, %v749
    %v752 = vmul.f32 %v736, %v750
    %v753 = vlaneseq
    %v754 = vshrl.u32 %v753, 7
    %v755 = vsub.s32 4, %v754
    %v756 = vrot.slane %v63, %v755
    %758 = vrot.lane.b32.xlu0 %v756, 32
    %v759 = vpop.permute.xlu0 %758
    %v761 = vmul.f32 %v751, %v759
    %v762 = vmul.f32 %v752, %v759
    %v763 = vlaneseq
    %v764 = vshrl.u32 %v763, 7
    %v765 = vsub.s32 5, %v764
    %v766 = vrot.slane %v63, %v765
    %768 = vrot.lane.b32.xlu0 %v766, 32
    %v769 = vpop.permute.xlu0 %768
    %v771 = vadd.f32 %v761, %v769
    %v772 = vadd.f32 %v762, %v769
    %775 = vrot.lane.b32.xlu0 %v771, 64
    %v776 = vpop.permute.xlu0 %775
    %777 = vrot.lane.b32.xlu0 %v772, 64
    %v778 = vpop.permute.xlu0 %777
    %v781 = vadd.f32 %v63, %v776
    %v782 = vadd.f32 %v64, %v778
    %785 = vrot.lane.b32.xlu0 %v781, 64
    %v786 = vpop.permute.xlu0 %785
    %787 = vrot.lane.b32.xlu0 %v782, 64
    %v788 = vpop.permute.xlu0 %787
    %v789 = vsel %vm89, %v786, 0
    %v791 = vsel %vm89, %v788, 0
    %793 = vmatprep.subr.mxu0 0.0
    %794 = vmatpush1.msra.mxu0 %v66
    %795 = vmatprep.subr.mxu0 0.0
    %796 = vmatpush1.msra.mxu0 %v68
    %797 = vmatprep.subr.mxu0 0.0
    %798 = vmatpush1.msra.mxu0 %v70
    %799 = vmatprep.subr.mxu0 0.0
    %800 = vmatpush1.msra.mxu0 %v72
    %801 = vmatprep.subr.mxu0 0.0
    %802 = vmatpush1.msra.mxu0 0.0
    %803 = vmatprep.subr.mxu0 0.0
    %804 = vmatpush1.msra.mxu0 0.0
    %805 = vmatprep.subr.mxu0 0.0
    %806 = vmatpush1.msra.mxu0 0.0
    %807 = vmatprep.subr.mxu0 0.0
    %808 = vmatpush1.msra.mxu0 0.0
    %809 = vmatprep.subr.mxu0 0.0
    %810 = vmatpush1.msra.mxu0 0.0
    %811 = vmatprep.subr.mxu0 0.0
    %812 = vmatpush1.msra.mxu0 0.0
    %813 = vmatprep.subr.mxu0 0.0
    %814 = vmatpush1.msra.mxu0 0.0
    %815 = vmatprep.subr.mxu0 0.0
    %816 = vmatpush1.msra.mxu0 0.0
    %817 = vmatprep.subr.mxu0 0.0
    %818 = vmatpush1.msra.mxu0 0.0
    %819 = vmatprep.subr.mxu0 0.0
    %820 = vmatpush1.msra.mxu0 0.0
    %821 = vmatprep.subr.mxu0 0.0
    %822 = vmatpush1.msra.mxu0 0.0
    %823 = vmatprep.subr.mxu0 0.0
    %824 = vmatpush1.msra.mxu0 0.0
    %825 = vmatprep.subr.mxu0 0.0
    %826 = vmatpush1.msra.mxu0 0.0
    %827 = vmatprep.subr.mxu0 0.0
    %828 = vmatpush1.msra.mxu0 0.0
    %829 = vmatprep.subr.mxu0 0.0
    %830 = vmatpush1.msra.mxu0 0.0
    %831 = vmatprep.subr.mxu0 0.0
    %832 = vmatpush1.msra.mxu0 0.0
    %833 = vmatprep.subr.mxu0 0.0
    %834 = vmatpush1.msra.mxu0 0.0
    %835 = vmatprep.subr.mxu0 0.0
    %836 = vmatpush1.msra.mxu0 0.0
    %837 = vmatprep.subr.mxu0 0.0
    %838 = vmatpush1.msra.mxu0 0.0
    %839 = vmatprep.subr.mxu0 0.0
    %840 = vmatpush1.msra.mxu0 0.0
    %841 = vmatprep.subr.mxu0 0.0
    %842 = vmatpush1.msra.mxu0 0.0
    %843 = vmatprep.subr.mxu0 0.0
    %844 = vmatpush1.msra.mxu0 0.0
    %845 = vmatprep.subr.mxu0 0.0
    %846 = vmatpush1.msra.mxu0 0.0
    %847 = vmatprep.subr.mxu0 0.0
    %848 = vmatpush1.msra.mxu0 0.0
    %849 = vmatprep.subr.mxu0 0.0
    %850 = vmatpush1.msra.mxu0 0.0
    %851 = vmatprep.subr.mxu0 0.0
    %852 = vmatpush1.msra.mxu0 0.0
    %853 = vmatprep.subr.mxu0 0.0
    %854 = vmatpush1.msra.mxu0 0.0
    %855 = vmatprep.subr.mxu0 0.0
    %856 = vmatpush1.msra.mxu0 0.0
    %857 = vmatprep.mubr.f32.mxu0 0.0
    %858 = vmatmul.mubr.f32.gmra.mrb[0].mxu0 %v789
    %v859 = vpop.f32.mrb[0].mxu0
    %v860 = vadd.f32 %v399, %v859
    %v861 = vpop.f32.mrb[0].mxu0
    %862 = vmatprep.mubr.f32.mxu0 0.0
    %863 = vmatmul.mubr.f32.gmra.mrb[0].mxu0 %v791
    %v864 = vpop.f32.mrb[0].mxu0
    %v865 = vadd.f32 %v404, %v864
    %v866 = vpop.f32.mrb[0].mxu0
    %867 = vdwg.mxu0
    %v868 = vsel %vm89, %v860, 0.0
    %869 = vadd.xlane.f32.xlu0 %v868
    %v870 = vpop.xlane.xlu0 %869
    %v871 = vsel %vm89, %v865, 0.0
    %872 = vadd.xlane.f32.xlu0 %v871
    %v873 = vpop.xlane.xlu0 %872
    %v874 = vmul.f32 %v870, %v732
    %v875 = vmul.f32 %v873, %v732
    %v876 = vsub.f32 %v860, %v874
    %v877 = vsub.f32 %v865, %v875
    %v878 = vmul.f32 %v876, %v876
    %v879 = vmul.f32 %v877, %v877
    %v880 = vsel %vm89, %v878, 0.0
    %881 = vadd.xlane.f32.xlu0 %v880
    %v882 = vpop.xlane.xlu0 %881
    %v883 = vsel %vm89, %v879, 0.0
    %884 = vadd.xlane.f32.xlu0 %v883
    %v885 = vpop.xlane.xlu0 %884
    %v886 = vmul.f32 %v882, %v732
    %v887 = vmul.f32 %v885, %v732
    %v888 = vadd.f32 %v886, 1e-05
    %v889 = vadd.f32 %v887, 1e-05
    %v890 = vrsqrt.pop %v888
    %v891 = vrsqrt.pop %v889
    %v892 = vmul.f32 %v876, %v890
    %v893 = vmul.f32 %v877, %v891
    %v894 = vlaneseq
    %v895 = vshrl.u32 %v894, 7
    %v896 = vsub.s32 7, %v895
    %v897 = vrot.slane %v63, %v896
    %899 = vrot.lane.b32.xlu0 %v897, 32
    %v900 = vpop.permute.xlu0 %899
    %v902 = vmul.f32 %v892, %v900
    %v903 = vmul.f32 %v893, %v900
    %v904 = vlaneseq
    %v905 = vshrl.u32 %v904, 7
    %v906 = vsub.s32 0, %v905
    %v907 = vrot.slane %v64, %v906
    %909 = vrot.lane.b32.xlu0 %v907, 32
    %v910 = vpop.permute.xlu0 %909
    %v912 = vadd.f32 %v902, %v910
    %v913 = vadd.f32 %v903, %v910
    %v914 = vmax.f32 %v912, 0.0
    %v915 = vmax.f32 %v913, 0.0
    %v916 = vlaneseq
    %v917 = vshrl.u32 %v916, 7
    %v918 = vsub.s32 1, %v917
    %v919 = vrot.slane %v64, %v918
    %920 = vrot.lane.b32.xlu0 %v66, 64
    %v921 = vpop.permute.xlu0 %920
    %922 = vrot.lane.b32.xlu0 %v68, 64
    %v923 = vpop.permute.xlu0 %922
    %924 = vrot.lane.b32.xlu0 %v70, 64
    %v925 = vpop.permute.xlu0 %924
    %926 = vrot.lane.b32.xlu0 %v72, 64
    %v927 = vpop.permute.xlu0 %926
    %933 = vrot.lane.b32.xlu0 %v919, 32
    %v934 = vpop.permute.xlu0 %933
    %v937 = vsel %vm89, %v914, 0
    %v940 = vsel %vm89, %v915, 0
    %942 = vmatprep.subr.mxu0 0.0
    %943 = vmatpush1.msra.mxu0 %v921
    %944 = vmatprep.subr.mxu0 0.0
    %945 = vmatpush1.msra.mxu0 %v923
    %946 = vmatprep.subr.mxu0 0.0
    %947 = vmatpush1.msra.mxu0 %v925
    %948 = vmatprep.subr.mxu0 0.0
    %949 = vmatpush1.msra.mxu0 %v927
    %950 = vmatprep.subr.mxu0 0.0
    %951 = vmatpush1.msra.mxu0 0.0
    %952 = vmatprep.subr.mxu0 0.0
    %953 = vmatpush1.msra.mxu0 0.0
    %954 = vmatprep.subr.mxu0 0.0
    %955 = vmatpush1.msra.mxu0 0.0
    %956 = vmatprep.subr.mxu0 0.0
    %957 = vmatpush1.msra.mxu0 0.0
    %958 = vmatprep.subr.mxu0 0.0
    %959 = vmatpush1.msra.mxu0 0.0
    %960 = vmatprep.subr.mxu0 0.0
    %961 = vmatpush1.msra.mxu0 0.0
    %962 = vmatprep.subr.mxu0 0.0
    %963 = vmatpush1.msra.mxu0 0.0
    %964 = vmatprep.subr.mxu0 0.0
    %965 = vmatpush1.msra.mxu0 0.0
    %966 = vmatprep.subr.mxu0 0.0
    %967 = vmatpush1.msra.mxu0 0.0
    %968 = vmatprep.subr.mxu0 0.0
    %969 = vmatpush1.msra.mxu0 0.0
    %970 = vmatprep.subr.mxu0 0.0
    %971 = vmatpush1.msra.mxu0 0.0
    %972 = vmatprep.subr.mxu0 0.0
    %973 = vmatpush1.msra.mxu0 0.0
    %974 = vmatprep.subr.mxu0 0.0
    %975 = vmatpush1.msra.mxu0 0.0
    %976 = vmatprep.subr.mxu0 0.0
    %977 = vmatpush1.msra.mxu0 0.0
    %978 = vmatprep.subr.mxu0 0.0
    %979 = vmatpush1.msra.mxu0 0.0
    %980 = vmatprep.subr.mxu0 0.0
    %981 = vmatpush1.msra.mxu0 0.0
    %982 = vmatprep.subr.mxu0 0.0
    %983 = vmatpush1.msra.mxu0 0.0
    %984 = vmatprep.subr.mxu0 0.0
    %985 = vmatpush1.msra.mxu0 0.0
    %986 = vmatprep.subr.mxu0 0.0
    %987 = vmatpush1.msra.mxu0 0.0
    %988 = vmatprep.subr.mxu0 0.0
    %989 = vmatpush1.msra.mxu0 0.0
    %990 = vmatprep.subr.mxu0 0.0
    %991 = vmatpush1.msra.mxu0 0.0
    %992 = vmatprep.subr.mxu0 0.0
    %993 = vmatpush1.msra.mxu0 0.0
    %994 = vmatprep.subr.mxu0 0.0
    %995 = vmatpush1.msra.mxu0 0.0
    %996 = vmatprep.subr.mxu0 0.0
    %997 = vmatpush1.msra.mxu0 0.0
    %998 = vmatprep.subr.mxu0 0.0
    %999 = vmatpush1.msra.mxu0 0.0
    %1000 = vmatprep.subr.mxu0 0.0
    %1001 = vmatpush1.msra.mxu0 0.0
    %1002 = vmatprep.subr.mxu0 0.0
    %1003 = vmatpush1.msra.mxu0 0.0
    %1004 = vmatprep.subr.mxu0 0.0
    %1005 = vmatpush1.msra.mxu0 0.0
    %1006 = vmatprep.mubr.f32.mxu0 0.0
    %1007 = vmatmul.mubr.f32.gmra.mrb[0].mxu0 %v937
    %v1008 = vpop.f32.mrb[0].mxu0
    %v1009 = vadd.f32 %v934, %v1008
    %v1010 = vpop.f32.mrb[0].mxu0
    %1011 = vmatprep.mubr.f32.mxu0 0.0
    %1012 = vmatmul.mubr.f32.gmra.mrb[0].mxu0 %v940
    %v1013 = vpop.f32.mrb[0].mxu0
    %v1014 = vadd.f32 %v934, %v1013
    %v1015 = vpop.f32.mrb[0].mxu0
    %1016 = vdwg.mxu0
    %v1017 = vsel %vm89, %v1009, 0.0
    %1018 = vadd.xlane.f32.xlu0 %v1017
    %v1019 = vpop.xlane.xlu0 %1018
    %v1020 = vsel %vm89, %v1014, 0.0
    %1021 = vadd.xlane.f32.xlu0 %v1020
    %v1022 = vpop.xlane.xlu0 %1021
    %v1023 = vmul.f32 %v1019, %v732
    %v1024 = vmul.f32 %v1022, %v732
    %v1025 = vsub.f32 %v1009, %v1023
    %v1026 = vsub.f32 %v1014, %v1024
    %v1027 = vmul.f32 %v1025, %v1025
    %v1028 = vmul.f32 %v1026, %v1026
    %v1029 = vsel %vm89, %v1027, 0.0
    %1030 = vadd.xlane.f32.xlu0 %v1029
    %v1031 = vpop.xlane.xlu0 %1030
    %v1032 = vsel %vm89, %v1028, 0.0
    %1033 = vadd.xlane.f32.xlu0 %v1032
    %v1034 = vpop.xlane.xlu0 %1033
    %v1035 = vmul.f32 %v1031, %v732
    %v1036 = vmul.f32 %v1034, %v732
    %v1037 = vadd.f32 %v1035, 1e-05
    %v1038 = vadd.f32 %v1036, 1e-05
    %v1039 = vrsqrt.pop %v1037
    %v1040 = vrsqrt.pop %v1038
    %v1041 = vmul.f32 %v1025, %v1039
    %v1042 = vmul.f32 %v1026, %v1040
    %v1043 = vlaneseq
    %v1044 = vshrl.u32 %v1043, 7
    %v1045 = vsub.s32 2, %v1044
    %v1046 = vrot.slane %v64, %v1045
    %1048 = vrot.lane.b32.xlu0 %v1046, 32
    %v1049 = vpop.permute.xlu0 %1048
    %v1051 = vmul.f32 %v1041, %v1049
    %v1052 = vmul.f32 %v1042, %v1049
    %v1053 = vlaneseq
    %v1054 = vshrl.u32 %v1053, 7
    %v1055 = vsub.s32 3, %v1054
    %v1056 = vrot.slane %v64, %v1055
    %1058 = vrot.lane.b32.xlu0 %v1056, 32
    %v1059 = vpop.permute.xlu0 %1058
    %v1061 = vadd.f32 %v1051, %v1059
    %v1062 = vadd.f32 %v1052, %v1059
    %v1063 = vmax.f32 %v1061, 0.0
    %v1064 = vmax.f32 %v1062, 0.0
    %1067 = vrot.lane.b32.xlu0 %v1063, 32
    %v1068 = vpop.permute.xlu0 %1067
    %1069 = vrot.lane.b32.xlu0 %v1064, 32
    %v1070 = vpop.permute.xlu0 %1069
    %1073 = vrot.lane.b32.xlu0 %v1063, 64
    %v1074 = vpop.permute.xlu0 %1073
    %1075 = vrot.lane.b32.xlu0 %v1064, 64
    %v1076 = vpop.permute.xlu0 %1075
    %1079 = vrot.lane.b32.xlu0 %v1063, 96
    %v1080 = vpop.permute.xlu0 %1079
    %1081 = vrot.lane.b32.xlu0 %v1064, 96
    %v1082 = vpop.permute.xlu0 %1081
    %v1085 = vsel %vm89, %v1063, %v1068
    %v1086 = vsel %vm89, %v1064, %v1070
    %vm1087 = vcmask 523264
    %v1088 = vsel %vm1087, %v1085, %v1074
    %v1089 = vsel %vm1087, %v1086, %v1076
    %vm1090 = vcmask 785408
    %v1091 = vsel %vm1090, %v1088, %v1080
    %v1092 = vsel %vm1090, %v1089, %v1082
    %v1093 = vld [vmem:[%s3] sm:$0x3]
    %v1095 = vlaneseq
    %v1096 = vshrl.u32 %v1095, 7
    %v1097 = vsub.s32 0, %v1096
    %v1098 = vrot.slane %v1093, %v1097
    %v1099 = vlaneseq
    %v1100 = vshrl.u32 %v1099, 7
    %v1101 = vsub.s32 1, %v1100
    %v1102 = vrot.slane %v1093, %v1101
    %v1105 = vadd.f32 %v1091, %v1098
    %v1106 = vadd.f32 %v1091, %v1102
    %v1107 = vadd.f32 %v1092, %v1098
    %v1108 = vadd.f32 %v1092, %v1102
    %1109 = vst [vmem:[#allocation8] sm:$0xff] %v1105
    %1110 = vst [vmem:[#allocation8 + $0x8] sm:$0xff] %v1106
    %1111 = vst [vmem:[#allocation8 + $0x10] sm:$0xff] %v1107
    %1112 = vst [vmem:[#allocation8 + $0x18] sm:$0xff] %v1108
    // Predicated region
    $region30: #{tpu_custom_call.1} parent=1 // pred_check
      _
    $region31: #{tpu_custom_call.1} parent=1 // pred_check_branch
      %1114 = sbr.rel (0) target = $region33
    $region32: #{tpu_custom_call.1} parent=1 // pred_region
      %s1116 = ssub.s32 512, 512
      %1117 = vsyncadd [#allocation4], %s1116
      %s1118 = sshll.u32 [#allocation8], 4
      %s1119 = int_to_ptr.vmem [resolvable:$true] %s1118
      %1124 = dma.vmem_to_hbm [thread:$0]  %s1119, 512, %s4, [#allocation4], 256, 256, 16
    $region33: #{tpu_custom_call.1} parent=1 // pred_fallthru
      _
    // Predicated region
    $region34: #{tpu_custom_call.1} parent=1 // pred_check
      _
    $region35: #{tpu_custom_call.1} parent=1 // pred_check_branch
      %1126 = sbr.rel (0) target = $region37
    $region36: #{tpu_custom_call.1} parent=1 // pred_region
      %1127 = dma.done [#allocation4], 512
    $region37: #{tpu_custom_call.1} parent=1 // pred_fallthru
      _
    %1128 = vsyncpa [#allocation3], 1
    %1129 = vsyncpa [#allocation6], 1
    %1130 = vsyncpa [#allocation4], 1

</llo_original>
